<compile_context>
chip_gen: v7x
topology: tpu7x:2x2x1
jax: 0.10.0
libtpu: 0.0.40
codegen_flags: <defaults>
</compile_context>

<pallas_src>
import functools

import jax
import jax.numpy as jnp
import numpy as np
from jax.experimental import pallas as pl
from jax.experimental.pallas import tpu as pltpu

BN_EPS = 1e-5
NCORES_SPLIT = 2          # leading 'parallel' axis of pass 1 (megacore on v7x)
_MIB = 1024 * 1024


def _round_up(x, m):
    return (x + m - 1) // m * m


def _cdiv(a, b):
    return (a + b - 1) // b


def _vmem_capacity_bytes():
    # Generation-aware VMEM sizing (v5e/v6e: 128 MiB, v7x: 64 MiB per TC).
    try:
        return int(pltpu.get_tpu_info().vmem_capacity_bytes)
    except Exception:
        return 64 * _MIB   # conservative fallback (v7x per-TC VMEM)


# ---------------------------------------------------------------------------
# Pass 1a: stats only (recompute path).  grid = (ncores, tiles_per_core)
# ---------------------------------------------------------------------------
def _stats_kernel(w_ref, p_ref, sum_ref, sumsq_ref):
    @pl.when(pl.program_id(1) == 0)
    def _():
        sum_ref[...] = jnp.zeros_like(sum_ref)
        sumsq_ref[...] = jnp.zeros_like(sumsq_ref)

    y = jnp.dot(w_ref[...], p_ref[...], preferred_element_type=jnp.float32)
    sum_ref[...] += jnp.sum(y, axis=1, keepdims=True)[None]
    sumsq_ref[...] += jnp.sum(y * y, axis=1, keepdims=True)[None]


# ---------------------------------------------------------------------------
# Pass 1b: conv output + stats (alias path).  grid = (ncores, tiles_per_core)
# ---------------------------------------------------------------------------
def _conv_stats_kernel(w_ref, p_ref, y_ref, sum_ref, sumsq_ref):
    @pl.when(pl.program_id(1) == 0)
    def _():
        sum_ref[...] = jnp.zeros_like(sum_ref)
        sumsq_ref[...] = jnp.zeros_like(sumsq_ref)

    y = jnp.dot(w_ref[...], p_ref[...], preferred_element_type=jnp.float32)
    y_ref[...] = y
    sum_ref[...] += jnp.sum(y, axis=1, keepdims=True)[None]
    sumsq_ref[...] += jnp.sum(y * y, axis=1, keepdims=True)[None]


# ---------------------------------------------------------------------------
# Pass 2a: fused conv + BN apply (recompute path): (scale*W) @ P + shift
# ---------------------------------------------------------------------------
def _conv_apply_kernel(ws_ref, p_ref, shift_ref, o_ref):
    o_ref[...] = (jnp.dot(ws_ref[...], p_ref[...],
                          preferred_element_type=jnp.float32)
                  + shift_ref[...]).astype(o_ref.dtype)


# ---------------------------------------------------------------------------
# Pass 2b: BN apply in place (alias path): y * scale + shift
# ---------------------------------------------------------------------------
def _bn_apply_kernel(y_ref, scale_ref, shift_ref, o_ref):
    o_ref[...] = (y_ref[...] * scale_ref[...] + shift_ref[...]).astype(o_ref.dtype)


@functools.partial(jax.jit, static_argnames=("stride", "padding", "dilation"))
def conv1d_bn(x, w, gamma, beta, *, stride=1, padding=0, dilation=1):
    """x: (N, C_in, L) f32; w: (C_out, C_in, k); gamma/beta: (C_out,)."""
    n, c_in, l = x.shape
    c_out, _, k = w.shape
    l_out = (l + 2 * padding - dilation * (k - 1) - 1) // stride + 1
    assert l_out > 0

    m = n * l_out
    ck = c_in * k
    c_out_p = _round_up(c_out, 8)
    ck_p = _round_up(ck, 8)

    # ---- generation-aware VMEM budget & lane-dense column tile -------------
    vmem_cap = _vmem_capacity_bytes()
    vmem_limit = min(vmem_cap, 128 * _MIB) * 3 // 4     # 48 MiB v7x / 96 MiB v5e,v6e
    tile_budget = vmem_limit // 2                       # double-buffered tile set
    bytes_per_col = 8 * (ck_p + 2 * c_out_p)            # worst pass, f32, 2 buffers
    tcol = tile_budget // max(bytes_per_col, 1)
    tcol = max(512, min(8192, (tcol // 512) * 512))
    tcol = min(tcol, _round_up(m, 128))                 # don't exceed the problem
    tcol = max(128, (tcol // 128) * 128)

    num_tiles = _cdiv(m, tcol)
    ncores = NCORES_SPLIT if num_tiles >= NCORES_SPLIT else 1
    tpc = _cdiv(num_tiles, ncores)                      # column tiles per core
    num_tiles = ncores * tpc
    m_pad = num_tiles * tcol

    # ---- glue (plain JAX): pad + im2col, laid out so the reshape is free ----
    x_t = jnp.transpose(x, (1, 0, 2)).astype(jnp.float32)        # (C_in, N, L)
    x_tp = jnp.pad(x_t, ((0, 0), (0, 0), (padding, padding)))
    span = (l_out - 1) * stride + 1
    taps = [x_tp[:, :, j * dilation: j * dilation + span: stride]  # (C_in,N,L_out)
            for j in range(k)]
    patches = jnp.stack(taps, axis=1).reshape(ck, m)             # (C_in*k, M)

    p_pad = jnp.pad(patches, ((0, ck_p - ck), (0, m_pad - m)))
    w2 = jnp.pad(w.reshape(c_out, ck).astype(jnp.float32),
                 ((0, c_out_p - c_out), (0, ck_p - ck)))
    gamma2 = jnp.pad(gamma.astype(jnp.float32), (0, c_out_p - c_out)).reshape(c_out_p, 1)
    beta2 = jnp.pad(beta.astype(jnp.float32), (0, c_out_p - c_out)).reshape(c_out_p, 1)

    # Recompute the GEMM in pass 2 when that moves fewer HBM bytes than writing,
    # re-reading and re-writing the raw conv output.
    recompute = ck_p < 2 * c_out_p

    cparams1 = pltpu.CompilerParams(
        dimension_semantics=("parallel", "arbitrary"),   # stats accumulate on axis 1
        vmem_limit_bytes=vmem_limit)
    cparams2 = pltpu.CompilerParams(
        dimension_semantics=("parallel",),
        vmem_limit_bytes=vmem_limit)

    w_spec = pl.BlockSpec((c_out_p, ck_p), lambda c, j: (0, 0))          # resident
    p_spec = pl.BlockSpec((ck_p, tcol), lambda c, j: (0, c * tpc + j))   # column tiles
    stats_out_specs = (
        pl.BlockSpec((1, c_out_p, 1), lambda c, j: (c, 0, 0)),   # per-core partial sum
        pl.BlockSpec((1, c_out_p, 1), lambda c, j: (c, 0, 0)),   # per-core partial sumsq
    )
    stats_out_shape = (
        jax.ShapeDtypeStruct((ncores, c_out_p, 1), jnp.float32),
        jax.ShapeDtypeStruct((ncores, c_out_p, 1), jnp.float32),
    )

    # ---- Pass 1: conv GEMM + per-channel stats ------------------------------
    if recompute:
        psum, psumsq = pl.pallas_call(
            _stats_kernel,
            grid=(ncores, tpc),
            in_specs=[w_spec, p_spec],
            out_specs=stats_out_specs,
            out_shape=stats_out_shape,
            compiler_params=cparams1,
        )(w2, p_pad)
        y_raw = None
    else:
        y_raw, psum, psumsq = pl.pallas_call(
            _conv_stats_kernel,
            grid=(ncores, tpc),
            in_specs=[w_spec, p_spec],
            out_specs=(pl.BlockSpec((c_out_p, tcol), lambda c, j: (0, c * tpc + j)),)
                      + stats_out_specs,
            out_shape=(jax.ShapeDtypeStruct((c_out_p, m_pad), jnp.float32),)
                      + stats_out_shape,
            compiler_params=cparams1,
        )(w2, p_pad)

    # ---- BN parameter math hoisted out of the per-tile kernel ---------------
    ch_sum = jnp.sum(psum, axis=0)                       # (c_out_p, 1)
    ch_sumsq = jnp.sum(psumsq, axis=0)                   # (c_out_p, 1)
    inv_count = 1.0 / float(m)
    mean = ch_sum * inv_count
    var = jnp.maximum(ch_sumsq * inv_count - mean * mean, 0.0)   # biased variance
    inv_std = jax.lax.rsqrt(var + BN_EPS)
    scale = gamma2 * inv_std                             # (c_out_p, 1)
    shift = beta2 - mean * scale                         # (c_out_p, 1)

    # ---- Pass 2: produce the normalized output ------------------------------
    if recompute:
        ws = scale * w2                                  # BN folded into the weights
        y_norm = pl.pallas_call(
            _conv_apply_kernel,
            grid=(num_tiles,),
            in_specs=[
                pl.BlockSpec((c_out_p, ck_p), lambda j: (0, 0)),
                pl.BlockSpec((ck_p, tcol), lambda j: (0, j)),
                pl.BlockSpec((c_out_p, 1), lambda j: (0, 0)),
            ],
            out_specs=pl.BlockSpec((c_out_p, tcol), lambda j: (0, j)),
            out_shape=jax.ShapeDtypeStruct((c_out_p, m_pad), jnp.float32),
            compiler_params=cparams2,
        )(ws, p_pad, shift)
    else:
        y_norm = pl.pallas_call(
            _bn_apply_kernel,
            grid=(num_tiles,),
            in_specs=[
                pl.BlockSpec((c_out_p, tcol), lambda j: (0, j)),
                pl.BlockSpec((c_out_p, 1), lambda j: (0, 0)),
                pl.BlockSpec((c_out_p, 1), lambda j: (0, 0)),
            ],
            out_specs=pl.BlockSpec((c_out_p, tcol), lambda j: (0, j)),
            out_shape=jax.ShapeDtypeStruct((c_out_p, m_pad), jnp.float32),
            input_output_aliases={0: 0},                 # overwrite y_raw in place
            compiler_params=cparams2,
        )(y_raw, scale, shift)

    # (C_out_p, M_pad) -> (N, C_out, L_out)   (layout plumbing kept outside)
    y = y_norm[:c_out, :m].reshape(c_out, n, l_out)
    return jnp.transpose(y, (1, 0, 2))


def _reference(x, w, gamma, beta, *, stride, padding, dilation):
    """Pure-JAX reference: lax conv + training-mode batchnorm."""
    y = jax.lax.conv_general_dilated(
        x, w,
        window_strides=(stride,),
        padding=[(padding, padding)],
        rhs_dilation=(dilation,),
        dimension_numbers=("NCH", "OIH", "NCH"),
    )
    mean = jnp.mean(y, axis=(0, 2), keepdims=True)
    var = jnp.mean((y - mean) ** 2, axis=(0, 2), keepdims=True)
    y_hat = (y - mean) * jax.lax.rsqrt(var + BN_EPS)
    return y_hat * gamma.reshape(1, -1, 1) + beta.reshape(1, -1, 1)


def _make_params(key, c_in, c_out, k):
    kw, kg, kb = jax.random.split(key, 3)
    fan_in = c_in * k
    bound = 1.0 / float(np.sqrt(fan_in))
    w = jax.random.uniform(kw, (c_out, c_in, k), jnp.float32, -bound, bound)
    gamma = 1.0 + 0.1 * jax.random.normal(kg, (c_out,), dtype=jnp.float32)
    beta = 0.1 * jax.random.normal(kb, (c_out,), dtype=jnp.float32)
    return w, gamma, beta


if __name__ == "__main__":
    key = jax.random.PRNGKey(0)
    kx, kp1, kp2, kx2 = jax.random.split(key, 4)

    # Small shapes consistent with the module's forward: x is (N, C_in, L).
    N, C_IN, C_OUT, L, K = 2, 4, 8, 16, 3
    x = jax.random.normal(kx, (N, C_IN, L), dtype=jnp.float32)
    w, gamma, beta = _make_params(kp1, C_IN, C_OUT, K)

    # Case 1: stride=1, padding=1, dilation=1  (alias / in-place BN path)
    out = conv1d_bn(x, w, gamma, beta, stride=1, padding=1, dilation=1)
    out = jax.block_until_ready(out)
    ref = _reference(x, w, gamma, beta, stride=1, padding=1, dilation=1)
    np.testing.assert_allclose(np.asarray(out), np.asarray(ref),
                               rtol=1e-4, atol=1e-4)

    # Case 2: strided + dilated conv exercises the generic im2col path.
    out2 = conv1d_bn(x, w, gamma, beta, stride=2, padding=1, dilation=2)
    out2 = jax.block_until_ready(out2)
    ref2 = _reference(x, w, gamma, beta, stride=2, padding=1, dilation=2)
    np.testing.assert_allclose(np.asarray(out2), np.asarray(ref2),
                               rtol=1e-4, atol=1e-4)

    # Case 3: C_in*k < 2*C_out exercises the fused recompute (no-y_raw) path.
    C_IN3, C_OUT3 = 2, 16
    x3 = jax.random.normal(kx2, (N, C_IN3, L), dtype=jnp.float32)
    w3, gamma3, beta3 = _make_params(kp2, C_IN3, C_OUT3, K)
    out3 = conv1d_bn(x3, w3, gamma3, beta3, stride=1, padding=1, dilation=1)
    out3 = jax.block_until_ready(out3)
    ref3 = _reference(x3, w3, gamma3, beta3, stride=1, padding=1, dilation=1)
    np.testing.assert_allclose(np.asarray(out3), np.asarray(ref3),
                               rtol=1e-4, atol=1e-4)

    print("KERNEL_OK")
</pallas_src>

<mosaic_0001>
module attributes {stable_mosaic.version = 11 : i64} {
  func.func @_bn_apply_kernel(%arg0: i32, %arg1: memref<8x128xf32, #tpu.memory_space<vmem>>, %arg2: memref<8x1xf32, #tpu.memory_space<vmem>>, %arg3: memref<8x1xf32, #tpu.memory_space<vmem>>, %arg4: memref<8x128xf32, #tpu.memory_space<vmem>>) attributes {dimension_semantics = [#tpu.dimension_semantics<parallel>], iteration_bounds = array<i64: 1>, scalar_prefetch = 0 : i64, scratch_operands = 0 : i64, tpu.core_type = #tpu.core_type<tc>, window_params = [{transform_indices = @transform_0, window_bounds = array<i64: 8, 128>}, {pipeline_mode = #tpu.pipeline_mode<synchronous>, transform_indices = @transform_1, window_bounds = array<i64: 8, 1>}, {pipeline_mode = #tpu.pipeline_mode<synchronous>, transform_indices = @transform_2, window_bounds = array<i64: 8, 1>}, {transform_indices = @transform_3, window_bounds = array<i64: 8, 128>}]} {
    %c0 = arith.constant 0 : index
    %c0_0 = arith.constant 0 : index
    %0 = vector.load %arg1[%c0, %c0_0] : memref<8x128xf32, #tpu.memory_space<vmem>>, vector<8x128xf32>
    %c0_1 = arith.constant 0 : index
    %c0_2 = arith.constant 0 : index
    %1 = vector.load %arg2[%c0_1, %c0_2] : memref<8x1xf32, #tpu.memory_space<vmem>>, vector<8x1xf32>
    %2 = vector.broadcast %1 : vector<8x1xf32> to vector<8x128xf32>
    %3 = arith.mulf %0, %2 : vector<8x128xf32>
    %c0_3 = arith.constant 0 : index
    %c0_4 = arith.constant 0 : index
    %4 = vector.load %arg3[%c0_3, %c0_4] : memref<8x1xf32, #tpu.memory_space<vmem>>, vector<8x1xf32>
    %5 = vector.broadcast %4 : vector<8x1xf32> to vector<8x128xf32>
    %6 = arith.addf %3, %5 : vector<8x128xf32>
    %c0_5 = arith.constant 0 : index
    %c0_6 = arith.constant 0 : index
    %7 = vector.load %arg4[%c0_5, %c0_6] : memref<8x128xf32, #tpu.memory_space<vmem>>, vector<8x128xf32>
    tpu.vector_store %arg4[%c0_5, %c0_6], %6 {strides = array<i32>} : memref<8x128xf32, #tpu.memory_space<vmem>>, vector<8x128xf32>,
    return
  }
  func.func @transform_0(%arg0: i32) -> (i32, i32) {
    %c0_i32 = arith.constant 0 : i32
    %c0_i32_0 = arith.constant 0 : i32
    return %c0_i32, %arg0 : i32, i32
  }
  func.func @transform_1(%arg0: i32) -> (i32, i32) {
    %c0_i32 = arith.constant 0 : i32
    %c0_i32_0 = arith.constant 0 : i32
    %c0_i32_1 = arith.constant 0 : i32
    return %c0_i32, %c0_i32_0 : i32, i32
  }
  func.func @transform_2(%arg0: i32) -> (i32, i32) {
    %c0_i32 = arith.constant 0 : i32
    %c0_i32_0 = arith.constant 0 : i32
    %c0_i32_1 = arith.constant 0 : i32
    return %c0_i32, %c0_i32_0 : i32, i32
  }
  func.func @transform_3(%arg0: i32) -> (i32, i32) {
    %c0_i32 = arith.constant 0 : i32
    %c0_i32_0 = arith.constant 0 : i32
    return %c0_i32, %arg0 : i32, i32
  }
}

module attributes {stable_mosaic.version = 11 : i64} {
  func.func @_conv_stats_kernel(%arg0: i32, %arg1: i32, %arg2: memref<8x16xf32, #tpu.memory_space<vmem>>, %arg3: memref<16x128xf32, #tpu.memory_space<vmem>>, %arg4: memref<8x128xf32, #tpu.memory_space<vmem>>, %arg5: memref<1x8x1xf32, #tpu.memory_space<vmem>>, %arg6: memref<1x8x1xf32, #tpu.memory_space<vmem>>) attributes {dimension_semantics = [#tpu.dimension_semantics<parallel>, #tpu.dimension_semantics<arbitrary>], iteration_bounds = array<i64: 1, 1>, scalar_prefetch = 0 : i64, scratch_operands = 0 : i64, tpu.core_type = #tpu.core_type<tc>, window_params = [{pipeline_mode = #tpu.pipeline_mode<synchronous>, transform_indices = @transform_0, window_bounds = array<i64: 8, 16>}, {transform_indices = @transform_1, window_bounds = array<i64: 16, 128>}, {transform_indices = @transform_2, window_bounds = array<i64: 8, 128>}, {transform_indices = @transform_3, window_bounds = array<i64: 1, 8, 1>}, {transform_indices = @transform_4, window_bounds = array<i64: 1, 8, 1>}]} {
    %c0_i32 = arith.constant 0 : i32
    %0 = arith.cmpi eq, %arg1, %c0_i32 : i32
    %1 = arith.extui %0 : i1 to i32
    %c0_i32_0 = arith.constant 0 : i32
    %2 = arith.cmpi ne, %1, %c0_i32_0 : i32
    scf.if %2 {
      %cst_20 = arith.constant 0.000000e+00 : f32
      %20 = vector.broadcast %cst_20 : f32 to vector<1x8x1xf32>
      %c0_21 = arith.constant 0 : index
      %c0_22 = arith.constant 0 : index
      %c0_23 = arith.constant 0 : index
      %21 = vector.load %arg5[%c0_21, %c0_22, %c0_23] : memref<1x8x1xf32, #tpu.memory_space<vmem>>, vector<1x8x1xf32>
      tpu.vector_store %arg5[%c0_21, %c0_22, %c0_23], %20 {strides = array<i32>} : memref<1x8x1xf32, #tpu.memory_space<vmem>>, vector<1x8x1xf32>,
      %cst_24 = arith.constant 0.000000e+00 : f32
      %22 = vector.broadcast %cst_24 : f32 to vector<1x8x1xf32>
      %c0_25 = arith.constant 0 : index
      %c0_26 = arith.constant 0 : index
      %c0_27 = arith.constant 0 : index
      %23 = vector.load %arg6[%c0_25, %c0_26, %c0_27] : memref<1x8x1xf32, #tpu.memory_space<vmem>>, vector<1x8x1xf32>
      tpu.vector_store %arg6[%c0_25, %c0_26, %c0_27], %22 {strides = array<i32>} : memref<1x8x1xf32, #tpu.memory_space<vmem>>, vector<1x8x1xf32>,
    } else {
    }
    %c0 = arith.constant 0 : index
    %c0_1 = arith.constant 0 : index
    %3 = vector.load %arg2[%c0, %c0_1] : memref<8x16xf32, #tpu.memory_space<vmem>>, vector<8x16xf32>
    %c0_2 = arith.constant 0 : index
    %c0_3 = arith.constant 0 : index
    %4 = vector.load %arg3[%c0_2, %c0_3] : memref<16x128xf32, #tpu.memory_space<vmem>>, vector<16x128xf32>
    %cst = arith.constant dense<0.000000e+00> : vector<8x128xf32>
    %5 = tpu.matmul %3, %4, %cst {dimension_numbers = #tpu.dot_dimension_numbers<[1], [0], [0], [1], [0, 0, 1, 1], [], []>} : vector<8x16xf32>, vector<16x128xf32>, vector<8x128xf32> -> vector<8x128xf32>
    %c0_4 = arith.constant 0 : index
    %c0_5 = arith.constant 0 : index
    %6 = vector.load %arg4[%c0_4, %c0_5] : memref<8x128xf32, #tpu.memory_space<vmem>>, vector<8x128xf32>
    tpu.vector_store %arg4[%c0_4, %c0_5], %5 {strides = array<i32>} : memref<8x128xf32, #tpu.memory_space<vmem>>, vector<8x128xf32>,
    %c0_6 = arith.constant 0 : index
    %c0_7 = arith.constant 0 : index
    %c0_8 = arith.constant 0 : index
    %7 = vector.load %arg5[%c0_6, %c0_7, %c0_8] : memref<1x8x1xf32, #tpu.memory_space<vmem>>, vector<1x8x1xf32>
    %cst_9 = arith.constant dense<0.000000e+00> : vector<8xf32>
    %8 = vector.multi_reduction <add>, %5, %cst_9 [1] : vector<8x128xf32> to vector<8xf32>
    %9 = vector.shape_cast %8 : vector<8xf32> to vector<8x1xf32>
    %10 = vector.shape_cast %9 : vector<8x1xf32> to vector<1x8x1xf32>
    %11 = arith.addf %7, %10 : vector<1x8x1xf32>
    %c0_10 = arith.constant 0 : index
    %c0_11 = arith.constant 0 : index
    %c0_12 = arith.constant 0 : index
    %12 = vector.load %arg5[%c0_10, %c0_11, %c0_12] : memref<1x8x1xf32, #tpu.memory_space<vmem>>, vector<1x8x1xf32>
    tpu.vector_store %arg5[%c0_10, %c0_11, %c0_12], %11 {strides = array<i32>} : memref<1x8x1xf32, #tpu.memory_space<vmem>>, vector<1x8x1xf32>,
    %c0_13 = arith.constant 0 : index
    %c0_14 = arith.constant 0 : index
    %c0_15 = arith.constant 0 : index
    %13 = vector.load %arg6[%c0_13, %c0_14, %c0_15] : memref<1x8x1xf32, #tpu.memory_space<vmem>>, vector<1x8x1xf32>
    %14 = arith.mulf %5, %5 : vector<8x128xf32>
    %cst_16 = arith.constant dense<0.000000e+00> : vector<8xf32>
    %15 = vector.multi_reduction <add>, %14, %cst_16 [1] : vector<8x128xf32> to vector<8xf32>
    %16 = vector.shape_cast %15 : vector<8xf32> to vector<8x1xf32>
    %17 = vector.shape_cast %16 : vector<8x1xf32> to vector<1x8x1xf32>
    %18 = arith.addf %13, %17 : vector<1x8x1xf32>
    %c0_17 = arith.constant 0 : index
    %c0_18 = arith.constant 0 : index
    %c0_19 = arith.constant 0 : index
    %19 = vector.load %arg6[%c0_17, %c0_18, %c0_19] : memref<1x8x1xf32, #tpu.memory_space<vmem>>, vector<1x8x1xf32>
    tpu.vector_store %arg6[%c0_17, %c0_18, %c0_19], %18 {strides = array<i32>} : memref<1x8x1xf32, #tpu.memory_space<vmem>>, vector<1x8x1xf32>,
    return
  }
  func.func @transform_0(%arg0: i32, %arg1: i32) -> (i32, i32) {
    %c0_i32 = arith.constant 0 : i32
    %c0_i32_0 = arith.constant 0 : i32
    %c0_i32_1 = arith.constant 0 : i32
    return %c0_i32, %c0_i32_0 : i32, i32
  }
  func.func @transform_1(%arg0: i32, %arg1: i32) -> (i32, i32) {
    %c1_i32 = arith.constant 1 : i32
    %0 = arith.muli %arg0, %c1_i32 : i32
    %1 = arith.addi %0, %arg1 : i32
    %c0_i32 = arith.constant 0 : i32
    %c0_i32_0 = arith.constant 0 : i32
    return %c0_i32, %1 : i32, i32
  }
  func.func @transform_2(%arg0: i32, %arg1: i32) -> (i32, i32) {
    %c1_i32 = arith.constant 1 : i32
    %0 = arith.muli %arg0, %c1_i32 : i32
    %1 = arith.addi %0, %arg1 : i32
    %c0_i32 = arith.constant 0 : i32
    %c0_i32_0 = arith.constant 0 : i32
    return %c0_i32, %1 : i32, i32
  }
  func.func @transform_3(%arg0: i32, %arg1: i32) -> (i32, i32, i32) {
    %c0_i32 = arith.constant 0 : i32
    %c0_i32_0 = arith.constant 0 : i32
    %c0_i32_1 = arith.constant 0 : i32
    return %arg0, %c0_i32, %c0_i32_0 : i32, i32, i32
  }
  func.func @transform_4(%arg0: i32, %arg1: i32) -> (i32, i32, i32) {
    %c0_i32 = arith.constant 0 : i32
    %c0_i32_0 = arith.constant 0 : i32
    %c0_i32_1 = arith.constant 0 : i32
    return %arg0, %c0_i32, %c0_i32_0 : i32, i32, i32
  }
}

</mosaic_0001>

<llo_original>
// kernel: conv1d_bn.2
$region0: #{conv1d_bn.2}
  #allocation0 [shape = 'u32[]', space=smem, size = 0x4, offset = 0x4, fixed_abs, tag = 'smem constant byte address 0x4 - core index']
  #allocation1 [shape = 'u32[144,128]{1,0:T(1,128)}', space=vmem, size = 0x12000, scoped, tag = 'internal scratch']
  %s0 = inlined_call_operand.vmem [shape: f32[8,16], index: 0, kind: input, shape index: {}]
  %s1 = inlined_call_operand.vmem [shape: f32[16,128], index: 1, kind: input, shape index: {}]
  %s2 = inlined_call_operand.vmem [shape: f32[8,128], index: 2, kind: output, shape index: {0}]
  %s3 = inlined_call_operand.vmem [shape: f32[1,8,1], index: 3, kind: output, shape index: {1}]
  %s4 = inlined_call_operand.vmem [shape: f32[1,8,1], index: 4, kind: output, shape index: {2}]
  %5 = xla_tuple %s2, %s3, %s4
  %s6 = sld [smem:[#allocation0]]
  $region38: #{conv1d_bn.2} parent=0
    _
  %s8 = ssub.s32 1, %s6
  %s9 = scalar_select 0, %s8, %s6
  // Predicated region
  $region2: #{conv1d_bn.2} parent=0 // pred_check
    _
  $region3: #{conv1d_bn.2} parent=0 // pred_check_branch
    %11 = sbr.rel (0) target = $region5
  $region4: #{conv1d_bn.2} parent=0 // pred_region
    _
  $region5: #{conv1d_bn.2} parent=0 // pred_fallthru
    _
  // Predicated region
  $region6: #{conv1d_bn.2} parent=0 // pred_check
    _
  $region7: #{conv1d_bn.2} parent=0 // pred_check_branch
    %13 = sbr.rel (0) target = $region9
  $region8: #{conv1d_bn.2} parent=0 // pred_region
    %s14 = sadd.s32 0, 0
    %p15 = scmp.lt.s32.totalorder %s14, 0
    %s16 = scalar_select %p15, %s14, 0
    %s17 = smul.addr %s16, 8
    %s18 = scalar_lea.vmem %s1, %s17
    %s19 = sadd.s32 0, 0
  $region9: #{conv1d_bn.2} parent=0 // pred_fallthru
    _
  %s20 = sadd.s32 0, 0
  %p21 = scmp.lt.s32.totalorder %s20, 0
  %s22 = scalar_select %p21, %s20, 0
  %s23 = smul.addr %s22, 8
  %s24 = scalar_lea.vmem %s1, %s23
  %s25 = sadd.s32 0, 0
  %p26 = scmp.lt.s32.totalorder %s25, 0
  %s27 = scalar_select %p26, %s25, 0
  %s28 = smul.addr %s27, 8
  %s29 = scalar_lea.vmem %s2, %s28
  %s30 = sadd.s32 0, 0
  %p31 = scmp.lt.s32.totalorder %s30, 0
  %s32 = scalar_select %p31, %s30, 0
  %s33 = smul.addr %s32, 8
  %s34 = scalar_lea.vmem %s1, %s33
  %s35 = sadd.s32 0, 0
  %s36 = sadd.s32 0, 0
  %p37 = scmp.lt.s32.totalorder %s36, 0
  %s38 = scalar_select %p37, %s36, 0
  %s39 = smul.addr %s38, 8
  %s40 = scalar_lea.vmem %s2, %s39
  %s41 = sadd.s32 0, 0
  %p42 = scmp.eq.s32.totalorder 0, 0
  // Predicated region
  $region10: #{conv1d_bn.2} parent=0 // pred_check
    %p43 = pneg %p42
  $region11: #{conv1d_bn.2} parent=0 // pred_check_branch
    %45 = sbr.rel (%p43) target = $region13
  $region12: #{conv1d_bn.2} parent=0 // pred_region
    %vm46 = vcmask 7168
    %47 = vst.msk [vmem:[%s3] sm:$0xff] %vm46, 0.0
    %48 = vst.msk [vmem:[%s4] sm:$0xff] %vm46, 0.0
  $region13: #{conv1d_bn.2} parent=0 // pred_fallthru
    _
  %v49 = vld [vmem:[%s0] sm:$0xff]
  %v50 = vld [vmem:[%s34] sm:$0xff]
  %v51 = vld [vmem:[%s34 + $0x8] sm:$0xff]
  %vm52 = vcmask 130048
  %v54 = vsel %vm52, %v49, 0
  %56 = vmatprep.subr.mxu0 0.0
  %57 = vmatpush1.msra.mxu0 %v50
  %58 = vmatprep.subr.mxu0 0.0
  %59 = vmatpush1.msra.mxu0 %v51
  %60 = vmatprep.subr.mxu0 0.0
  %61 = vmatpush1.msra.mxu0 0.0
  %62 = vmatprep.subr.mxu0 0.0
  %63 = vmatpush1.msra.mxu0 0.0
  %64 = vmatprep.subr.mxu0 0.0
  %65 = vmatpush1.msra.mxu0 0.0
  %66 = vmatprep.subr.mxu0 0.0
  %67 = vmatpush1.msra.mxu0 0.0
  %68 = vmatprep.subr.mxu0 0.0
  %69 = vmatpush1.msra.mxu0 0.0
  %70 = vmatprep.subr.mxu0 0.0
  %71 = vmatpush1.msra.mxu0 0.0
  %72 = vmatprep.subr.mxu0 0.0
  %73 = vmatpush1.msra.mxu0 0.0
  %74 = vmatprep.subr.mxu0 0.0
  %75 = vmatpush1.msra.mxu0 0.0
  %76 = vmatprep.subr.mxu0 0.0
  %77 = vmatpush1.msra.mxu0 0.0
  %78 = vmatprep.subr.mxu0 0.0
  %79 = vmatpush1.msra.mxu0 0.0
  %80 = vmatprep.subr.mxu0 0.0
  %81 = vmatpush1.msra.mxu0 0.0
  %82 = vmatprep.subr.mxu0 0.0
  %83 = vmatpush1.msra.mxu0 0.0
  %84 = vmatprep.subr.mxu0 0.0
  %85 = vmatpush1.msra.mxu0 0.0
  %86 = vmatprep.subr.mxu0 0.0
  %87 = vmatpush1.msra.mxu0 0.0
  %88 = vmatprep.subr.mxu0 0.0
  %89 = vmatpush1.msra.mxu0 0.0
  %90 = vmatprep.subr.mxu0 0.0
  %91 = vmatpush1.msra.mxu0 0.0
  %92 = vmatprep.subr.mxu0 0.0
  %93 = vmatpush1.msra.mxu0 0.0
  %94 = vmatprep.subr.mxu0 0.0
  %95 = vmatpush1.msra.mxu0 0.0
  %96 = vmatprep.subr.mxu0 0.0
  %97 = vmatpush1.msra.mxu0 0.0
  %98 = vmatprep.subr.mxu0 0.0
  %99 = vmatpush1.msra.mxu0 0.0
  %100 = vmatprep.subr.mxu0 0.0
  %101 = vmatpush1.msra.mxu0 0.0
  %102 = vmatprep.subr.mxu0 0.0
  %103 = vmatpush1.msra.mxu0 0.0
  %104 = vmatprep.subr.mxu0 0.0
  %105 = vmatpush1.msra.mxu0 0.0
  %106 = vmatprep.subr.mxu0 0.0
  %107 = vmatpush1.msra.mxu0 0.0
  %108 = vmatprep.subr.mxu0 0.0
  %109 = vmatpush1.msra.mxu0 0.0
  %110 = vmatprep.subr.mxu0 0.0
  %111 = vmatpush1.msra.mxu0 0.0
  %112 = vmatprep.subr.mxu0 0.0
  %113 = vmatpush1.msra.mxu0 0.0
  %114 = vmatprep.subr.mxu0 0.0
  %115 = vmatpush1.msra.mxu0 0.0
  %116 = vmatprep.subr.mxu0 0.0
  %117 = vmatpush1.msra.mxu0 0.0
  %118 = vmatprep.subr.mxu0 0.0
  %119 = vmatpush1.msra.mxu0 0.0
  %120 = vmatprep.mubr.f32.mxu0 0.0
  %121 = vmatmul.mubr.f32.gmra.mrb[0].mxu0 %v54
  %v122 = vpop.f32.mrb[0].mxu0
  %v123 = vadd.f32 0.0, %v122
  %v124 = vpop.f32.mrb[0].mxu0
  %125 = vdwg.mxu0
  %126 = vst [vmem:[%s40] sm:$0xff] %v123
  %v127 = vld [vmem:[%s3] sm:$0xff]
  %128 = vadd.xlane.f32.xlu0 %v123
  %v129 = vpop.xlane.xlu0 %128
  %v130 = vadd.f32 %v127, %v129
  %vm131 = vcmask 7168
  %132 = vst.msk [vmem:[%s3] sm:$0xff] %vm131, %v130
  %v133 = vld [vmem:[%s4] sm:$0xff]
  %v134 = vmul.f32 %v123, %v123
  %135 = vadd.xlane.f32.xlu0 %v134
  %v136 = vpop.xlane.xlu0 %135
  %v137 = vadd.f32 %v133, %v136
  %138 = vst.msk [vmem:[%s4] sm:$0xff] %vm131, %v137
  %s139 = sadd.s32 0, 0
  %p140 = scmp.lt.s32.totalorder %s139, 0
  %s141 = scalar_select %p140, %s139, 0
  %s142 = smul.addr %s141, 8
  %s143 = scalar_lea.vmem %s2, %s142
  // Predicated region
  $region14: #{conv1d_bn.2} parent=0 // pred_check
    _
  $region15: #{conv1d_bn.2} parent=0 // pred_check_branch
    %145 = sbr.rel (0) target = $region17
  $region16: #{conv1d_bn.2} parent=0 // pred_region
    %s146 = sadd.s32 0, 0
  $region17: #{conv1d_bn.2} parent=0 // pred_fallthru
    _
  // Predicated region
  $region18: #{conv1d_bn.2} parent=0 // pred_check
    _
  $region19: #{conv1d_bn.2} parent=0 // pred_check_branch
    %148 = sbr.rel (0) target = $region21
  $region20: #{conv1d_bn.2} parent=0 // pred_region
    _
  $region21: #{conv1d_bn.2} parent=0 // pred_fallthru
    _
  // Predicated region
  $region22: #{conv1d_bn.2} parent=0 // pred_check
    _
  $region23: #{conv1d_bn.2} parent=0 // pred_check_branch
    %150 = sbr.rel (0) target = $region25
  $region24: #{conv1d_bn.2} parent=0 // pred_region
    _
  $region25: #{conv1d_bn.2} parent=0 // pred_fallthru
    _
  // Predicated region
  $region26: #{conv1d_bn.2} parent=0 // pred_check
    _
  $region27: #{conv1d_bn.2} parent=0 // pred_check_branch
    %152 = sbr.rel (0) target = $region29
  $region28: #{conv1d_bn.2} parent=0 // pred_region
    %s153 = sadd.s32 0, 0
    %p154 = scmp.lt.s32.totalorder %s153, 0
    %s155 = scalar_select %p154, %s153, 0
    %s156 = smul.addr %s155, 8
    %s157 = scalar_lea.vmem %s2, %s156
  $region29: #{conv1d_bn.2} parent=0 // pred_fallthru
    _
  // Predicated region
  $region30: #{conv1d_bn.2} parent=0 // pred_check
    _
  $region31: #{conv1d_bn.2} parent=0 // pred_check_branch
    %159 = sbr.rel (0) target = $region33
  $region32: #{conv1d_bn.2} parent=0 // pred_region
    _
  $region33: #{conv1d_bn.2} parent=0 // pred_fallthru
    _
  // Predicated region
  $region34: #{conv1d_bn.2} parent=0 // pred_check
    _
  $region35: #{conv1d_bn.2} parent=0 // pred_check_branch
    %161 = sbr.rel (0) target = $region37
  $region36: #{conv1d_bn.2} parent=0 // pred_region
    _
  $region37: #{conv1d_bn.2} parent=0 // pred_fallthru
    _

// kernel: conv1d_bn.3
$region0: #{conv1d_bn.3}
  #allocation0 [shape = 'u32[]', space=smem, size = 0x4, offset = 0x4, fixed_abs, tag = 'smem constant byte address 0x4 - core index']
  #allocation1 [shape = 'u32[144,128]{1,0:T(1,128)}', space=vmem, size = 0x12000, scoped, tag = 'internal scratch']
  %s0 = inlined_call_operand.vmem [shape: f32[8,128], index: 0, kind: input, shape index: {}, may-alias: {0,3}]
  %s1 = inlined_call_operand.vmem [shape: f32[8,1], index: 1, kind: input, shape index: {}]
  %s2 = inlined_call_operand.vmem [shape: f32[8,1], index: 2, kind: input, shape index: {}]
  %s3 = inlined_call_operand.vmem [shape: f32[8,128], index: 3, kind: output, shape index: {}, may-alias: {0,3}]
  %s4 = sld [smem:[#allocation0]]
  $region22: #{conv1d_bn.3} parent=0
    _
  %s6 = ssub.s32 1, %s4
  %s7 = scalar_select 0, %s6, %s4
  // Predicated region
  $region2: #{conv1d_bn.3} parent=0 // pred_check
    _
  $region3: #{conv1d_bn.3} parent=0 // pred_check_branch
    %9 = sbr.rel (0) target = $region5
  $region4: #{conv1d_bn.3} parent=0 // pred_region
    _
  $region5: #{conv1d_bn.3} parent=0 // pred_fallthru
    _
  // Predicated region
  $region6: #{conv1d_bn.3} parent=0 // pred_check
    _
  $region7: #{conv1d_bn.3} parent=0 // pred_check_branch
    %11 = sbr.rel (0) target = $region9
  $region8: #{conv1d_bn.3} parent=0 // pred_region
    _
  $region9: #{conv1d_bn.3} parent=0 // pred_fallthru
    _
  // Predicated region
  $region10: #{conv1d_bn.3} parent=0 // pred_check
    _
  $region11: #{conv1d_bn.3} parent=0 // pred_check_branch
    %13 = sbr.rel (0) target = $region13
  $region12: #{conv1d_bn.3} parent=0 // pred_region
    _
  $region13: #{conv1d_bn.3} parent=0 // pred_fallthru
    _
  %v14 = vld [vmem:[%s0] sm:$0xff]
  %v15 = vld [vmem:[%s1] sm:$0xff]
  %17 = vset.pattern.permute.xlu0 0
  %18 = vperm.xlu0 %17, %v15
  %v19 = vpop.permute.xlu0 %18
  %v21 = vmul.f32 %v14, %v19
  %v22 = vld [vmem:[%s2] sm:$0xff]
  %24 = vset.pattern.permute.xlu0 0
  %25 = vperm.xlu0 %24, %v22
  %v26 = vpop.permute.xlu0 %25
  %v28 = vadd.f32 %v21, %v26
  %29 = vst [vmem:[%s3] sm:$0xff] %v28
  // Predicated region
  $region14: #{conv1d_bn.3} parent=0 // pred_check
    _
  $region15: #{conv1d_bn.3} parent=0 // pred_check_branch
    %31 = sbr.rel (0) target = $region17
  $region16: #{conv1d_bn.3} parent=0 // pred_region
    _
  $region17: #{conv1d_bn.3} parent=0 // pred_fallthru
    _
  // Predicated region
  $region18: #{conv1d_bn.3} parent=0 // pred_check
    _
  $region19: #{conv1d_bn.3} parent=0 // pred_check_branch
    %33 = sbr.rel (0) target = $region21
  $region20: #{conv1d_bn.3} parent=0 // pred_region
    _
  $region21: #{conv1d_bn.3} parent=0 // pred_fallthru
    _

</llo_original>
